<compile_context>
chip_gen: v6e
topology: v6e:2x2x1
jax: 0.10.0
libtpu: 0.0.40
codegen_flags: <defaults>
</compile_context>

<pallas_src>
import functools

import jax
import jax.numpy as jnp
from jax import lax
from jax.experimental import pallas as pl
from jax.experimental.pallas import tpu as pltpu


# ----------------------------------------------------------------------------
# Kernel 1: farthest point sampling (one batch element per grid step)
# ----------------------------------------------------------------------------
def fps_kernel(init_ref,          # SMEM (B,)   int32  (scalar prefetch)
               xt_ref,            # VMEM (3, N) f32    lane-dense points
               xn_ref,            # VMEM (N, 3) f32    row-major points (gather)
               sampled_ref,       # out  (S, 3) f32
               idx_smem):         # SMEM (S,)   int32  scratch (chosen indices)
    b = pl.program_id(0)
    N = xt_ref.shape[1]
    S = sampled_ref.shape[0]

    xt = xt_ref[...]                                   # (3, N) — lives in vregs
    x0 = xt[0:1, :]
    x1 = xt[1:2, :]
    x2 = xt[2:3, :]
    lane = lax.broadcasted_iota(jnp.int32, (1, N), 1)  # point index per lane

    dist0 = jnp.full((1, N), 1e10, dtype=jnp.float32)  # torch.ones(N) * 1e10
    c0 = init_ref[b].astype(jnp.int32)

    def body(i, carry):
        dist, c = carry                                # (1, N) f32 (in regs), scalar int32
        idx_smem[i] = c                                # record sample i (scalar store)

        # Centroid coordinates via one masked cross-lane reduce: (3, 1).
        onehot = lane == c
        cxyz = jnp.sum(jnp.where(onehot, xt, 0.0), axis=1, keepdims=True)
        cx = cxyz[0:1, :]
        cy = cxyz[1:2, :]
        cz = cxyz[2:3, :]

        # Squared distance to the centroid — pure VPU on lane-dense rows.
        dxx = x0 - cx
        dyy = x1 - cy
        dzz = x2 - cz
        d = dxx * dxx + dyy * dyy + dzz * dzz          # (1, N)

        dist = jnp.where(d < dist, d, dist)            # running min

        # argmax (first occurrence on ties, matching torch/jnp argmax)
        m = jnp.max(dist)
        cand = jnp.where(dist == m, lane, N)
        c_next = jnp.min(cand).astype(jnp.int32)
        return dist, c_next

    lax.fori_loop(0, S, body, (dist0, c0))

    # Single gather + store pass for all S samples (outside the serial chain).
    def gather(i, _):
        c = idx_smem[i]
        sampled_ref[pl.ds(i, 1), :] = xn_ref[pl.ds(c, 1), :]
        return 0

    lax.fori_loop(0, S, gather, 0)


# ----------------------------------------------------------------------------
# Kernel 2: batched 3-layer MLP over all B*S sampled points at once
# ----------------------------------------------------------------------------
def mlp_kernel(sp_ref,                     # (M, 3)
               w1_ref, b1_ref,             # (3, 64),  (1, 64)
               w2_ref, b2_ref,             # (64, 128),(1, 128)
               w3_ref, b3_ref,             # (128, D), (1, D)
               out_ref):                   # (M, D)
    sp = sp_ref[...]
    w1 = w1_ref[...]
    # Layer 1: K=3 massively under-fills the MXU — do 3 VPU broadcast-FMAs.
    h1 = (sp[:, 0:1] * w1[0:1, :]
          + sp[:, 1:2] * w1[1:2, :]
          + sp[:, 2:3] * w1[2:3, :]) + b1_ref[...]
    h1 = jnp.maximum(h1, 0.0)
    h2 = jnp.dot(h1, w2_ref[...], preferred_element_type=jnp.float32) + b2_ref[...]
    h2 = jnp.maximum(h2, 0.0)
    out_ref[...] = (jnp.dot(h2, w3_ref[...], preferred_element_type=jnp.float32)
                    + b3_ref[...])


# ----------------------------------------------------------------------------
# Wrapper
# ----------------------------------------------------------------------------
def fps_downsample(x, params, init_idx, n_samples):
    """x: (B, N, 3) f32, init_idx: (B,) int32 initial centroid per batch."""
    B, N, in_dim = x.shape
    w1, b1, w2, b2, w3, b3 = params
    out_dim = w3.shape[1]
    S = n_samples

    x = x.astype(jnp.float32)
    x_t = jnp.transpose(x, (0, 2, 1))                  # (B, 3, N) lane-dense

    grid_spec = pltpu.PrefetchScalarGridSpec(
        num_scalar_prefetch=1,
        grid=(B,),
        in_specs=[
            pl.BlockSpec((None, in_dim, N), lambda b, init: (b, 0, 0)),   # x_t
            pl.BlockSpec((None, N, in_dim), lambda b, init: (b, 0, 0)),   # x
        ],
        out_specs=pl.BlockSpec((None, S, in_dim), lambda b, init: (b, 0, 0)),
        scratch_shapes=[pltpu.SMEM((S,), jnp.int32)],
    )

    sampled = pl.pallas_call(
        fps_kernel,
        out_shape=jax.ShapeDtypeStruct((B, S, in_dim), jnp.float32),
        grid_spec=grid_spec,
        compiler_params=pltpu.CompilerParams(
            dimension_semantics=("parallel",)),        # megacore on v7x
    )(init_idx.astype(jnp.int32), x_t, x)

    # Batched MLP over all B*S rows in one pass (proper MXU shapes, one call).
    M = B * S
    sp_flat = sampled.reshape(M, in_dim)
    Mp = ((M + 7) // 8) * 8
    if Mp != M:
        sp_flat = jnp.pad(sp_flat, ((0, Mp - M), (0, 0)))

    feats_flat = pl.pallas_call(
        mlp_kernel,
        out_shape=jax.ShapeDtypeStruct((Mp, out_dim), jnp.float32),
    )(sp_flat, w1, b1, w2, b2, w3, b3)

    feats = feats_flat[:M].reshape(B, S, out_dim)
    return sampled, feats


# ----------------------------------------------------------------------------
# Pure-JAX reference mirroring the PyTorch forward
# ----------------------------------------------------------------------------
def fps_downsample_ref(x, params, init_idx, n_samples):
    w1, b1, w2, b2, w3, b3 = params
    B, N, in_dim = x.shape

    def one_batch(xb, c0):
        def body(i, carry):
            c, dist, samples = carry
            cpt = xb[c]                                # (3,)
            samples = samples.at[i].set(cpt)
            d = jnp.sum((xb - cpt[None, :]) ** 2, axis=-1)
            dist = jnp.where(d < dist, d, dist)
            c = jnp.argmax(dist).astype(jnp.int32)
            return (c, dist, samples)

        dist0 = jnp.full((N,), 1e10, jnp.float32)
        samples0 = jnp.zeros((n_samples, in_dim), jnp.float32)
        _, _, samples = lax.fori_loop(0, n_samples, body, (c0, dist0, samples0))
        return samples

    sampled = jax.vmap(one_batch)(x, init_idx.astype(jnp.int32))
    h1 = jax.nn.relu(sampled @ w1 + b1)
    h2 = jax.nn.relu(h1 @ w2 + b2)
    feats = h2 @ w3 + b3
    return sampled, feats


if __name__ == "__main__":
    B, N, in_dim, out_dim, n_samples = 2, 128, 3, 128, 16

    key = jax.random.PRNGKey(0)
    ks = jax.random.split(key, 8)
    x = jax.random.normal(ks[0], (B, N, in_dim), jnp.float32)

    # Shapes from nn.Linear(3,64) / (64,128) / (128,out_dim), stored (in, out).
    w1 = jax.random.normal(ks[1], (in_dim, 64), jnp.float32) * 0.1
    b1 = jax.random.normal(ks[2], (1, 64), jnp.float32) * 0.01
    w2 = jax.random.normal(ks[3], (64, 128), jnp.float32) * 0.1
    b2 = jax.random.normal(ks[4], (1, 128), jnp.float32) * 0.01
    w3 = jax.random.normal(ks[5], (128, out_dim), jnp.float32) * 0.1
    b3 = jax.random.normal(ks[6], (1, out_dim), jnp.float32) * 0.01
    params = (w1, b1, w2, b2, w3, b3)

    # torch.randint(0, N, (B,)) equivalent — deterministic here.
    init_idx = jax.random.randint(ks[7], (B,), 0, N, dtype=jnp.int32)

    run = jax.jit(functools.partial(fps_downsample, n_samples=n_samples))
    sampled, feats = run(x, params, init_idx)
    jax.block_until_ready((sampled, feats))

    sampled_ref, feats_ref = fps_downsample_ref(x, params, init_idx, n_samples)
    assert jnp.allclose(sampled, sampled_ref, atol=1e-5), "sampled points mismatch"
    assert jnp.allclose(feats, feats_ref, atol=2e-2, rtol=2e-2), "features mismatch"

    print("KERNEL_OK")
</pallas_src>

<mosaic_0001>
module attributes {stable_mosaic.version = 11 : i64} {
  func.func @fps_kernel(%arg0: i32, %arg1: memref<2xi32, #tpu.memory_space<smem>>, %arg2: memref<1x3x128xf32, #tpu.memory_space<vmem>>, %arg3: memref<1x128x3xf32, #tpu.memory_space<vmem>>, %arg4: memref<1x16x3xf32, #tpu.memory_space<vmem>>, %arg5: memref<16xi32, #tpu.memory_space<smem>>) attributes {dimension_semantics = [#tpu.dimension_semantics<parallel>], iteration_bounds = array<i64: 2>, scalar_prefetch = 1 : i64, scratch_operands = 1 : i64, tpu.core_type = #tpu.core_type<tc>, window_params = [{transform_indices = @transform_0, window_bounds = array<i64: 1, 3, 128>}, {transform_indices = @transform_1, window_bounds = array<i64: 1, 128, 3>}, {transform_indices = @transform_2, window_bounds = array<i64: 1, 16, 3>}]} {
    %c0 = arith.constant 0 : index
    %c0_0 = arith.constant 0 : index
    %c0_1 = arith.constant 0 : index
    %0 = vector.load %arg2[%c0, %c0_0, %c0_1] : memref<1x3x128xf32, #tpu.memory_space<vmem>>, vector<1x3x128xf32>
    %1 = vector.shape_cast %0 : vector<1x3x128xf32> to vector<3x128xf32>
    %2 = vector.extract_strided_slice %1 {offsets = [0, 0], sizes = [1, 128], strides = [1, 1]} : vector<3x128xf32> to vector<1x128xf32>
    %3 = vector.extract_strided_slice %1 {offsets = [1, 0], sizes = [1, 128], strides = [1, 1]} : vector<3x128xf32> to vector<1x128xf32>
    %4 = vector.extract_strided_slice %1 {offsets = [2, 0], sizes = [1, 128], strides = [1, 1]} : vector<3x128xf32> to vector<1x128xf32>
    %5 = tpu.iota {dimensions = array<i32: 1>} : vector<1x128xi32>
    %cst = arith.constant 1.000000e+10 : f32
    %6 = vector.broadcast %cst : f32 to vector<1x128xf32>
    %7 = arith.index_cast %arg0 : i32 to index
    %8 = memref.load %arg1[%7] : memref<2xi32, #tpu.memory_space<smem>>
    %c0_i32 = arith.constant 0 : i32
    %c16_i32 = arith.constant 16 : i32
    %9 = arith.addi %c0_i32, %c16_i32 : i32
    %c1_i32 = arith.constant 1 : i32
    %10:2 = scf.for %arg6 = %c0_i32 to %9 step %c1_i32 iter_args(%arg7 = %6, %arg8 = %8) -> (vector<1x128xf32>, i32)  : i32 {
      %12 = arith.index_cast %arg6 : i32 to index
      %13 = memref.load %arg5[%12] : memref<16xi32, #tpu.memory_space<smem>>
      memref.store %arg8, %arg5[%12] : memref<16xi32, #tpu.memory_space<smem>>
      %14 = vector.broadcast %arg8 : i32 to vector<1x128xi32>
      %15 = arith.cmpi eq, %5, %14 : vector<1x128xi32>
      %cst_7 = arith.constant 0.000000e+00 : f32
      %16 = vector.shape_cast %15 : vector<1x128xi1> to vector<1x128xi1>
      %17 = vector.broadcast %16 : vector<1x128xi1> to vector<3x128xi1>
      %18 = vector.broadcast %cst_7 : f32 to vector<3x128xf32>
      %19 = arith.select %17, %1, %18 : vector<3x128xi1>, vector<3x128xf32>
      %cst_8 = arith.constant dense<0.000000e+00> : vector<3xf32>
      %20 = vector.multi_reduction <add>, %19, %cst_8 [1] : vector<3x128xf32> to vector<3xf32>
      %21 = vector.shape_cast %20 : vector<3xf32> to vector<3x1xf32>
      %22 = vector.extract_strided_slice %21 {offsets = [0, 0], sizes = [1, 1], strides = [1, 1]} : vector<3x1xf32> to vector<1x1xf32>
      %23 = vector.extract_strided_slice %21 {offsets = [1, 0], sizes = [1, 1], strides = [1, 1]} : vector<3x1xf32> to vector<1x1xf32>
      %24 = vector.extract_strided_slice %21 {offsets = [2, 0], sizes = [1, 1], strides = [1, 1]} : vector<3x1xf32> to vector<1x1xf32>
      %25 = vector.broadcast %22 : vector<1x1xf32> to vector<1x128xf32>
      %26 = arith.subf %2, %25 : vector<1x128xf32>
      %27 = vector.broadcast %23 : vector<1x1xf32> to vector<1x128xf32>
      %28 = arith.subf %3, %27 : vector<1x128xf32>
      %29 = vector.broadcast %24 : vector<1x1xf32> to vector<1x128xf32>
      %30 = arith.subf %4, %29 : vector<1x128xf32>
      %31 = arith.mulf %26, %26 : vector<1x128xf32>
      %32 = arith.mulf %28, %28 : vector<1x128xf32>
      %33 = arith.addf %31, %32 : vector<1x128xf32>
      %34 = arith.mulf %30, %30 : vector<1x128xf32>
      %35 = arith.addf %33, %34 : vector<1x128xf32>
      %36 = arith.cmpf olt, %35, %arg7 : vector<1x128xf32>
      %37 = arith.select %36, %35, %arg7 : vector<1x128xi1>, vector<1x128xf32>
      %38 = vector.shape_cast %37 : vector<1x128xf32> to vector<1x1x128xf32>
      %cst_9 = arith.constant dense<0xFF800000> : vector<1xf32>
      %39 = vector.multi_reduction <maximumf>, %38, %cst_9 [1, 2] : vector<1x1x128xf32> to vector<1xf32>
      %40 = vector.shape_cast %39 : vector<1xf32> to vector<1x1x1xf32>
      %41 = vector.extract %40[0, 0, 0] : f32 from vector<1x1x1xf32>
      %42 = vector.broadcast %41 : f32 to vector<1x128xf32>
      %43 = arith.cmpf oeq, %37, %42 : vector<1x128xf32>
      %c128_i32 = arith.constant 128 : i32
      %44 = vector.broadcast %c128_i32 : i32 to vector<1x128xi32>
      %45 = arith.select %43, %5, %44 : vector<1x128xi1>, vector<1x128xi32>
      %46 = vector.shape_cast %45 : vector<1x128xi32> to vector<1x1x128xi32>
      %cst_10 = arith.constant dense<2147483647> : vector<1xi32>
      %47 = vector.multi_reduction <minsi>, %46, %cst_10 [1, 2] : vector<1x1x128xi32> to vector<1xi32>
      %48 = vector.shape_cast %47 : vector<1xi32> to vector<1x1x1xi32>
      %49 = vector.extract %48[0, 0, 0] : i32 from vector<1x1x1xi32>
      scf.yield %37, %49 : vector<1x128xf32>, i32
    }
    %c16_i32_2 = arith.constant 16 : i32
    %c0_i32_3 = arith.constant 0 : i32
    %c16_i32_4 = arith.constant 16 : i32
    %11 = arith.addi %c0_i32_3, %c16_i32_4 : i32
    %c1_i32_5 = arith.constant 1 : i32
    scf.for %arg6 = %c0_i32_3 to %11 step %c1_i32_5  : i32 {
      %12 = arith.index_cast %arg6 : i32 to index
      %13 = memref.load %arg5[%12] : memref<16xi32, #tpu.memory_space<smem>>
      %c0_7 = arith.constant 0 : index
      %14 = arith.index_cast %13 : i32 to index
      %c0_8 = arith.constant 0 : index
      %15 = vector.load %arg3[%c0_7, %14, %c0_8] : memref<1x128x3xf32, #tpu.memory_space<vmem>>, vector<1x1x3xf32>
      %16 = vector.shape_cast %15 : vector<1x1x3xf32> to vector<1x3xf32>
      %c0_9 = arith.constant 0 : index
      %17 = arith.index_cast %arg6 : i32 to index
      %c0_10 = arith.constant 0 : index
      %18 = vector.load %arg4[%c0_9, %17, %c0_10] : memref<1x16x3xf32, #tpu.memory_space<vmem>>, vector<1x1x3xf32>
      %19 = vector.shape_cast %18 : vector<1x1x3xf32> to vector<1x3xf32>
      %20 = vector.shape_cast %16 : vector<1x3xf32> to vector<1x1x3xf32>
      tpu.vector_store %arg4[%c0_9, %17, %c0_10], %20 {strides = array<i32>} : memref<1x16x3xf32, #tpu.memory_space<vmem>>, vector<1x1x3xf32>,
    }
    %c16_i32_6 = arith.constant 16 : i32
    return
  }
  func.func @transform_0(%arg0: i32, %arg1: memref<2xi32, #tpu.memory_space<smem>>) -> (i32, i32, i32) {
    %c0_i32 = arith.constant 0 : i32
    %c0_i32_0 = arith.constant 0 : i32
    %c0_i32_1 = arith.constant 0 : i32
    return %arg0, %c0_i32, %c0_i32_0 : i32, i32, i32
  }
  func.func @transform_1(%arg0: i32, %arg1: memref<2xi32, #tpu.memory_space<smem>>) -> (i32, i32, i32) {
    %c0_i32 = arith.constant 0 : i32
    %c0_i32_0 = arith.constant 0 : i32
    %c0_i32_1 = arith.constant 0 : i32
    return %arg0, %c0_i32, %c0_i32_0 : i32, i32, i32
  }
  func.func @transform_2(%arg0: i32, %arg1: memref<2xi32, #tpu.memory_space<smem>>) -> (i32, i32, i32) {
    %c0_i32 = arith.constant 0 : i32
    %c0_i32_0 = arith.constant 0 : i32
    %c0_i32_1 = arith.constant 0 : i32
    return %arg0, %c0_i32, %c0_i32_0 : i32, i32, i32
  }
}

module attributes {stable_mosaic.version = 11 : i64} {
  func.func @mlp_kernel(%arg0: memref<32x3xf32, #tpu.memory_space<vmem>>, %arg1: memref<3x64xf32, #tpu.memory_space<vmem>>, %arg2: memref<1x64xf32, #tpu.memory_space<vmem>>, %arg3: memref<64x128xf32, #tpu.memory_space<vmem>>, %arg4: memref<1x128xf32, #tpu.memory_space<vmem>>, %arg5: memref<128x128xf32, #tpu.memory_space<vmem>>, %arg6: memref<1x128xf32, #tpu.memory_space<vmem>>, %arg7: memref<32x128xf32, #tpu.memory_space<vmem>>) attributes {dimension_semantics = [], scalar_prefetch = 0 : i64, scratch_operands = 0 : i64, tpu.core_type = #tpu.core_type<tc>} {
    %c0 = arith.constant 0 : index
    %c0_0 = arith.constant 0 : index
    %0 = vector.load %arg0[%c0, %c0_0] : memref<32x3xf32, #tpu.memory_space<vmem>>, vector<32x3xf32>
    %c0_1 = arith.constant 0 : index
    %c0_2 = arith.constant 0 : index
    %1 = vector.load %arg1[%c0_1, %c0_2] : memref<3x64xf32, #tpu.memory_space<vmem>>, vector<3x64xf32>
    %2 = vector.extract_strided_slice %0 {offsets = [0, 0], sizes = [32, 1], strides = [1, 1]} : vector<32x3xf32> to vector<32x1xf32>
    %3 = vector.extract_strided_slice %1 {offsets = [0, 0], sizes = [1, 64], strides = [1, 1]} : vector<3x64xf32> to vector<1x64xf32>
    %4 = vector.broadcast %2 : vector<32x1xf32> to vector<32x64xf32>
    %5 = vector.broadcast %3 : vector<1x64xf32> to vector<32x64xf32>
    %6 = arith.mulf %4, %5 : vector<32x64xf32>
    %7 = vector.extract_strided_slice %0 {offsets = [0, 1], sizes = [32, 1], strides = [1, 1]} : vector<32x3xf32> to vector<32x1xf32>
    %8 = vector.extract_strided_slice %1 {offsets = [1, 0], sizes = [1, 64], strides = [1, 1]} : vector<3x64xf32> to vector<1x64xf32>
    %9 = vector.broadcast %7 : vector<32x1xf32> to vector<32x64xf32>
    %10 = vector.broadcast %8 : vector<1x64xf32> to vector<32x64xf32>
    %11 = arith.mulf %9, %10 : vector<32x64xf32>
    %12 = arith.addf %6, %11 : vector<32x64xf32>
    %13 = vector.extract_strided_slice %0 {offsets = [0, 2], sizes = [32, 1], strides = [1, 1]} : vector<32x3xf32> to vector<32x1xf32>
    %14 = vector.extract_strided_slice %1 {offsets = [2, 0], sizes = [1, 64], strides = [1, 1]} : vector<3x64xf32> to vector<1x64xf32>
    %15 = vector.broadcast %13 : vector<32x1xf32> to vector<32x64xf32>
    %16 = vector.broadcast %14 : vector<1x64xf32> to vector<32x64xf32>
    %17 = arith.mulf %15, %16 : vector<32x64xf32>
    %18 = arith.addf %12, %17 : vector<32x64xf32>
    %c0_3 = arith.constant 0 : index
    %c0_4 = arith.constant 0 : index
    %19 = vector.load %arg2[%c0_3, %c0_4] : memref<1x64xf32, #tpu.memory_space<vmem>>, vector<1x64xf32>
    %20 = vector.broadcast %19 : vector<1x64xf32> to vector<32x64xf32>
    %21 = arith.addf %18, %20 : vector<32x64xf32>
    %cst = arith.constant 0.000000e+00 : f32
    %22 = vector.broadcast %cst : f32 to vector<32x64xf32>
    %23 = arith.maximumf %21, %22 : vector<32x64xf32>
    %c0_5 = arith.constant 0 : index
    %c0_6 = arith.constant 0 : index
    %24 = vector.load %arg3[%c0_5, %c0_6] : memref<64x128xf32, #tpu.memory_space<vmem>>, vector<64x128xf32>
    %cst_7 = arith.constant dense<0.000000e+00> : vector<32x128xf32>
    %25 = tpu.matmul %23, %24, %cst_7 {dimension_numbers = #tpu.dot_dimension_numbers<[1], [0], [0], [1], [0, 0, 1, 1], [], []>} : vector<32x64xf32>, vector<64x128xf32>, vector<32x128xf32> -> vector<32x128xf32>
    %c0_8 = arith.constant 0 : index
    %c0_9 = arith.constant 0 : index
    %26 = vector.load %arg4[%c0_8, %c0_9] : memref<1x128xf32, #tpu.memory_space<vmem>>, vector<1x128xf32>
    %27 = vector.broadcast %26 : vector<1x128xf32> to vector<32x128xf32>
    %28 = arith.addf %25, %27 : vector<32x128xf32>
    %cst_10 = arith.constant 0.000000e+00 : f32
    %29 = vector.broadcast %cst_10 : f32 to vector<32x128xf32>
    %30 = arith.maximumf %28, %29 : vector<32x128xf32>
    %c0_11 = arith.constant 0 : index
    %c0_12 = arith.constant 0 : index
    %31 = vector.load %arg5[%c0_11, %c0_12] : memref<128x128xf32, #tpu.memory_space<vmem>>, vector<128x128xf32>
    %cst_13 = arith.constant dense<0.000000e+00> : vector<32x128xf32>
    %32 = tpu.matmul %30, %31, %cst_13 {dimension_numbers = #tpu.dot_dimension_numbers<[1], [0], [0], [1], [0, 0, 1, 1], [], []>} : vector<32x128xf32>, vector<128x128xf32>, vector<32x128xf32> -> vector<32x128xf32>
    %c0_14 = arith.constant 0 : index
    %c0_15 = arith.constant 0 : index
    %33 = vector.load %arg6[%c0_14, %c0_15] : memref<1x128xf32, #tpu.memory_space<vmem>>, vector<1x128xf32>
    %34 = vector.broadcast %33 : vector<1x128xf32> to vector<32x128xf32>
    %35 = arith.addf %32, %34 : vector<32x128xf32>
    %c0_16 = arith.constant 0 : index
    %c0_17 = arith.constant 0 : index
    %36 = vector.load %arg7[%c0_16, %c0_17] : memref<32x128xf32, #tpu.memory_space<vmem>>, vector<32x128xf32>
    tpu.vector_store %arg7[%c0_16, %c0_17], %35 {strides = array<i32>} : memref<32x128xf32, #tpu.memory_space<vmem>>, vector<32x128xf32>,
    return
  }
}

</mosaic_0001>

<llo_original>
// kernel: fps_downsample.3
$region0: #{fps_downsample.3}
  #allocation0 [shape = 'u32[]', space=smem, size = 0x4, offset = 0x4, fixed_abs, tag = 'smem constant byte address 0x4 - core index']
  #allocation1 [shape = 'u32[144,128]{1,0:T(1,128)}', space=vmem, size = 0x12000, scoped, tag = 'internal scratch']
  %s0 = inlined_call_operand.vmem [shape: f32[32,3], index: 0, kind: input, shape index: {}]
  %s1 = inlined_call_operand.vmem [shape: f32[3,64], index: 1, kind: input, shape index: {}]
  %s2 = inlined_call_operand.vmem [shape: f32[1,64], index: 2, kind: input, shape index: {}]
  %s3 = inlined_call_operand.vmem [shape: f32[64,128], index: 3, kind: input, shape index: {}]
  %s4 = inlined_call_operand.vmem [shape: f32[1,128], index: 4, kind: input, shape index: {}]
  %s5 = inlined_call_operand.vmem [shape: f32[128,128], index: 5, kind: input, shape index: {}]
  %s6 = inlined_call_operand.vmem [shape: f32[1,128], index: 6, kind: input, shape index: {}]
  %s7 = inlined_call_operand.hbm [shape: f32[32,128], index: 7, kind: output, shape index: {}]
  %s8 = sld [smem:[#allocation0]]
  $region38: #{fps_downsample.3} parent=0
    _
  %s10 = ssub.s32 1, %s8
  %s11 = scalar_select 0, %s10, %s8
  $region1: #{fps_downsample.3} parent=0
    #allocation2 [shape = 'u8[16384]{0}', space=vmem, size = 0x4000, scoped, tag = 'output window, operand 0, single buffered']
    #allocation3 [shape = 's32[1]{0}', space=sflag, size = 0x4, scoped, tag = 'scoped memory for fps_downsample.3']
    %12 = vsyncpa [#allocation3], 0
    // Predicated region
    $region2: #{fps_downsample.3} parent=1 // pred_check
      _
    $region3: #{fps_downsample.3} parent=1 // pred_check_branch
      %14 = sbr.rel (0) target = $region5
    $region4: #{fps_downsample.3} parent=1 // pred_region
      _
    $region5: #{fps_downsample.3} parent=1 // pred_fallthru
      _
    // Predicated region
    $region6: #{fps_downsample.3} parent=1 // pred_check
      _
    $region7: #{fps_downsample.3} parent=1 // pred_check_branch
      %16 = sbr.rel (0) target = $region9
    $region8: #{fps_downsample.3} parent=1 // pred_region
      _
    $region9: #{fps_downsample.3} parent=1 // pred_fallthru
      _
    // Predicated region
    $region10: #{fps_downsample.3} parent=1 // pred_check
      _
    $region11: #{fps_downsample.3} parent=1 // pred_check_branch
      %18 = sbr.rel (0) target = $region13
    $region12: #{fps_downsample.3} parent=1 // pred_region
      _
    $region13: #{fps_downsample.3} parent=1 // pred_fallthru
      _
    // Predicated region
    $region14: #{fps_downsample.3} parent=1 // pred_check
      _
    $region15: #{fps_downsample.3} parent=1 // pred_check_branch
      %20 = sbr.rel (0) target = $region17
    $region16: #{fps_downsample.3} parent=1 // pred_region
      _
    $region17: #{fps_downsample.3} parent=1 // pred_fallthru
      _
    // Predicated region
    $region18: #{fps_downsample.3} parent=1 // pred_check
      _
    $region19: #{fps_downsample.3} parent=1 // pred_check_branch
      %22 = sbr.rel (0) target = $region21
    $region20: #{fps_downsample.3} parent=1 // pred_region
      _
    $region21: #{fps_downsample.3} parent=1 // pred_fallthru
      _
    // Predicated region
    $region22: #{fps_downsample.3} parent=1 // pred_check
      _
    $region23: #{fps_downsample.3} parent=1 // pred_check_branch
      %24 = sbr.rel (0) target = $region25
    $region24: #{fps_downsample.3} parent=1 // pred_region
      _
    $region25: #{fps_downsample.3} parent=1 // pred_fallthru
      _
    // Predicated region
    $region26: #{fps_downsample.3} parent=1 // pred_check
      _
    $region27: #{fps_downsample.3} parent=1 // pred_check_branch
      %26 = sbr.rel (0) target = $region29
    $region28: #{fps_downsample.3} parent=1 // pred_region
      _
    $region29: #{fps_downsample.3} parent=1 // pred_fallthru
      _
    %v27 = vld [vmem:[%s0] sm:$0xff]
    %v28 = vld [vmem:[%s0 + $0x8] sm:$0xff]
    %v29 = vld [vmem:[%s0 + $0x10] sm:$0xff]
    %v30 = vld [vmem:[%s0 + $0x18] sm:$0xff]
    %v31 = vld [vmem:[%s1] sm:$0x7]
    %33 = vset.pattern.permute.xlu0 0
    %34 = vperm.xlu0 %33, %v27
    %v35 = vpop.permute.xlu0 %34
    %38 = vset.pattern.permute.xlu0 0
    %39 = vperm.xlu0 %38, %v28
    %v40 = vpop.permute.xlu0 %39
    %43 = vset.pattern.permute.xlu0 0
    %44 = vperm.xlu0 %43, %v29
    %v45 = vpop.permute.xlu0 %44
    %48 = vset.pattern.permute.xlu0 0
    %49 = vperm.xlu0 %48, %v30
    %v50 = vpop.permute.xlu0 %49
    %v52 = vlaneseq
    %v53 = vshrl.u32 %v52, 7
    %v54 = vsub.s32 0, %v53
    %v55 = vrot.slane %v31, %v54
    %v56 = vmul.f32 %v35, %v55
    %v57 = vmul.f32 %v40, %v55
    %v58 = vmul.f32 %v45, %v55
    %v59 = vmul.f32 %v50, %v55
    %60 = vset.pattern.permute.xlu0 1
    %61 = vperm.xlu0 %60, %v27
    %v62 = vpop.permute.xlu0 %61
    %64 = vset.pattern.permute.xlu0 1
    %65 = vperm.xlu0 %64, %v28
    %v66 = vpop.permute.xlu0 %65
    %68 = vset.pattern.permute.xlu0 1
    %69 = vperm.xlu0 %68, %v29
    %v70 = vpop.permute.xlu0 %69
    %72 = vset.pattern.permute.xlu0 1
    %73 = vperm.xlu0 %72, %v30
    %v74 = vpop.permute.xlu0 %73
    %v76 = vlaneseq
    %v77 = vshrl.u32 %v76, 7
    %v78 = vsub.s32 1, %v77
    %v79 = vrot.slane %v31, %v78
    %v80 = vmul.f32 %v62, %v79
    %v81 = vmul.f32 %v66, %v79
    %v82 = vmul.f32 %v70, %v79
    %v83 = vmul.f32 %v74, %v79
    %v84 = vadd.f32 %v56, %v80
    %v85 = vadd.f32 %v57, %v81
    %v86 = vadd.f32 %v58, %v82
    %v87 = vadd.f32 %v59, %v83
    %88 = vset.pattern.permute.xlu0 2
    %89 = vperm.xlu0 %88, %v27
    %v90 = vpop.permute.xlu0 %89
    %92 = vset.pattern.permute.xlu0 2
    %93 = vperm.xlu0 %92, %v28
    %v94 = vpop.permute.xlu0 %93
    %96 = vset.pattern.permute.xlu0 2
    %97 = vperm.xlu0 %96, %v29
    %v98 = vpop.permute.xlu0 %97
    %100 = vset.pattern.permute.xlu0 2
    %101 = vperm.xlu0 %100, %v30
    %v102 = vpop.permute.xlu0 %101
    %v104 = vlaneseq
    %v105 = vshrl.u32 %v104, 7
    %v106 = vsub.s32 2, %v105
    %v107 = vrot.slane %v31, %v106
    %v108 = vmul.f32 %v90, %v107
    %v109 = vmul.f32 %v94, %v107
    %v110 = vmul.f32 %v98, %v107
    %v111 = vmul.f32 %v102, %v107
    %v112 = vadd.f32 %v84, %v108
    %v113 = vadd.f32 %v85, %v109
    %v114 = vadd.f32 %v86, %v110
    %v115 = vadd.f32 %v87, %v111
    %v116 = vld [vmem:[%s2] sm:$0x1]
    %v118 = vlaneseq
    %v119 = vshrl.u32 %v118, 7
    %v120 = vsub.s32 0, %v119
    %v121 = vrot.slane %v116, %v120
    %v123 = vadd.f32 %v112, %v121
    %v124 = vadd.f32 %v113, %v121
    %v125 = vadd.f32 %v114, %v121
    %v126 = vadd.f32 %v115, %v121
    %v127 = vmax.f32 %v123, 0.0
    %v128 = vmax.f32 %v124, 0.0
    %v129 = vmax.f32 %v125, 0.0
    %v130 = vmax.f32 %v126, 0.0
    %v131 = vld [vmem:[%s3] sm:$0xff]
    %v132 = vld [vmem:[%s3 + $0x8] sm:$0xff]
    %v133 = vld [vmem:[%s3 + $0x10] sm:$0xff]
    %v134 = vld [vmem:[%s3 + $0x18] sm:$0xff]
    %v135 = vld [vmem:[%s3 + $0x20] sm:$0xff]
    %v136 = vld [vmem:[%s3 + $0x28] sm:$0xff]
    %v137 = vld [vmem:[%s3 + $0x30] sm:$0xff]
    %v138 = vld [vmem:[%s3 + $0x38] sm:$0xff]
    %v139 = vld [vmem:[%s4] sm:$0x1]
    %v141 = vlaneseq
    %v142 = vshrl.u32 %v141, 7
    %v143 = vsub.s32 0, %v142
    %v144 = vrot.slane %v139, %v143
    %vm146 = vcmask 523264
    %v148 = vsel %vm146, %v127, 0
    %v151 = vsel %vm146, %v128, 0
    %v154 = vsel %vm146, %v129, 0
    %v157 = vsel %vm146, %v130, 0
    %159 = vmatprep.subr.mxu0 0.0
    %160 = vmatpush1.msra.mxu0 0.0
    %161 = vmatprep.subr.mxu0 0.0
    %162 = vmatpush1.msra.mxu0 0.0
    %163 = vmatprep.subr.mxu0 0.0
    %164 = vmatpush1.msra.mxu0 0.0
    %165 = vmatprep.subr.mxu0 0.0
    %166 = vmatpush1.msra.mxu0 0.0
    %167 = vmatprep.subr.mxu0 0.0
    %168 = vmatpush1.msra.mxu0 0.0
    %169 = vmatprep.subr.mxu0 0.0
    %170 = vmatpush1.msra.mxu0 0.0
    %171 = vmatprep.subr.mxu0 0.0
    %172 = vmatpush1.msra.mxu0 0.0
    %173 = vmatprep.subr.mxu0 0.0
    %174 = vmatpush1.msra.mxu0 0.0
    %175 = vmatprep.subr.mxu0 0.0
    %176 = vmatpush1.msra.mxu0 %v138
    %177 = vmatprep.subr.mxu0 0.0
    %178 = vmatpush1.msra.mxu0 %v137
    %179 = vmatprep.subr.mxu0 0.0
    %180 = vmatpush1.msra.mxu0 %v136
    %181 = vmatprep.subr.mxu0 0.0
    %182 = vmatpush1.msra.mxu0 %v135
    %183 = vmatprep.subr.mxu0 0.0
    %184 = vmatpush1.msra.mxu0 %v134
    %185 = vmatprep.subr.mxu0 0.0
    %186 = vmatpush1.msra.mxu0 %v133
    %187 = vmatprep.subr.mxu0 0.0
    %188 = vmatpush1.msra.mxu0 %v132
    %189 = vmatprep.subr.mxu0 0.0
    %190 = vmatpush1.msra.mxu0 %v131
    %191 = vmatprep.subr.mxu0 0.0
    %192 = vmatpush2.msra.mxu0 0.0
    %193 = vmatprep.subr.mxu0 0.0
    %194 = vmatpush2.msra.mxu0 0.0
    %195 = vmatprep.subr.mxu0 0.0
    %196 = vmatpush2.msra.mxu0 0.0
    %197 = vmatprep.subr.mxu0 0.0
    %198 = vmatpush2.msra.mxu0 0.0
    %199 = vmatprep.subr.mxu0 0.0
    %200 = vmatpush2.msra.mxu0 0.0
    %201 = vmatprep.subr.mxu0 0.0
    %202 = vmatpush2.msra.mxu0 0.0
    %203 = vmatprep.subr.mxu0 0.0
    %204 = vmatpush2.msra.mxu0 0.0
    %205 = vmatprep.subr.mxu0 0.0
    %206 = vmatpush2.msra.mxu0 0.0
    %207 = vmatprep.subr.mxu0 0.0
    %208 = vmatpush2.msra.mxu0 0.0
    %209 = vmatprep.subr.mxu0 0.0
    %210 = vmatpush2.msra.mxu0 0.0
    %211 = vmatprep.subr.mxu0 0.0
    %212 = vmatpush2.msra.mxu0 0.0
    %213 = vmatprep.subr.mxu0 0.0
    %214 = vmatpush2.msra.mxu0 0.0
    %215 = vmatprep.subr.mxu0 0.0
    %216 = vmatpush2.msra.mxu0 0.0
    %217 = vmatprep.subr.mxu0 0.0
    %218 = vmatpush2.msra.mxu0 0.0
    %219 = vmatprep.subr.mxu0 0.0
    %220 = vmatpush2.msra.mxu0 0.0
    %221 = vmatprep.subr.mxu0 0.0
    %222 = vmatpush2.msra.mxu0 0.0
    %223 = vmatprep.mubr.f32.mxu0 0.0
    %224 = vmatmul.mubr.f32.gmra.mxu0 %v148
    %v225 = vpop.f32.mrf.mxu0
    %v226 = vadd.f32 %v144, %v225
    %v227 = vpop.f32.mrf.mxu0
    %228 = vmatprep.mubr.f32.mxu0 0.0
    %229 = vmatmul.mubr.f32.gmra.mxu0 %v151
    %v230 = vpop.f32.mrf.mxu0
    %v231 = vadd.f32 %v144, %v230
    %v232 = vpop.f32.mrf.mxu0
    %233 = vmatprep.mubr.f32.mxu0 0.0
    %234 = vmatmul.mubr.f32.gmra.mxu0 %v154
    %v235 = vpop.f32.mrf.mxu0
    %v236 = vadd.f32 %v144, %v235
    %v237 = vpop.f32.mrf.mxu0
    %238 = vmatprep.mubr.f32.mxu0 0.0
    %239 = vmatmul.mubr.f32.gmra.mxu0 %v157
    %v240 = vpop.f32.mrf.mxu0
    %v241 = vadd.f32 %v144, %v240
    %v242 = vpop.f32.mrf.mxu0
    %243 = vdwg.mxu0
    %v244 = vmax.f32 %v226, 0.0
    %v245 = vmax.f32 %v231, 0.0
    %v246 = vmax.f32 %v236, 0.0
    %v247 = vmax.f32 %v241, 0.0
    %v248 = vld [vmem:[%s5] sm:$0xff]
    %v249 = vld [vmem:[%s5 + $0x8] sm:$0xff]
    %v250 = vld [vmem:[%s5 + $0x10] sm:$0xff]
    %v251 = vld [vmem:[%s5 + $0x18] sm:$0xff]
    %v252 = vld [vmem:[%s5 + $0x20] sm:$0xff]
    %v253 = vld [vmem:[%s5 + $0x28] sm:$0xff]
    %v254 = vld [vmem:[%s5 + $0x30] sm:$0xff]
    %v255 = vld [vmem:[%s5 + $0x38] sm:$0xff]
    %v256 = vld [vmem:[%s5 + $0x40] sm:$0xff]
    %v257 = vld [vmem:[%s5 + $0x48] sm:$0xff]
    %v258 = vld [vmem:[%s5 + $0x50] sm:$0xff]
    %v259 = vld [vmem:[%s5 + $0x58] sm:$0xff]
    %v260 = vld [vmem:[%s5 + $0x60] sm:$0xff]
    %v261 = vld [vmem:[%s5 + $0x68] sm:$0xff]
    %v262 = vld [vmem:[%s5 + $0x70] sm:$0xff]
    %v263 = vld [vmem:[%s5 + $0x78] sm:$0xff]
    %v264 = vld [vmem:[%s6] sm:$0x1]
    %v266 = vlaneseq
    %v267 = vshrl.u32 %v266, 7
    %v268 = vsub.s32 0, %v267
    %v269 = vrot.slane %v264, %v268
    %271 = vmatprep.subr.mxu0 0.0
    %272 = vmatpush1.msra.mxu0 %v263
    %273 = vmatprep.subr.mxu0 0.0
    %274 = vmatpush1.msra.mxu0 %v262
    %275 = vmatprep.subr.mxu0 0.0
    %276 = vmatpush1.msra.mxu0 %v261
    %277 = vmatprep.subr.mxu0 0.0
    %278 = vmatpush1.msra.mxu0 %v260
    %279 = vmatprep.subr.mxu0 0.0
    %280 = vmatpush1.msra.mxu0 %v259
    %281 = vmatprep.subr.mxu0 0.0
    %282 = vmatpush1.msra.mxu0 %v258
    %283 = vmatprep.subr.mxu0 0.0
    %284 = vmatpush1.msra.mxu0 %v257
    %285 = vmatprep.subr.mxu0 0.0
    %286 = vmatpush1.msra.mxu0 %v256
    %287 = vmatprep.subr.mxu0 0.0
    %288 = vmatpush1.msra.mxu0 %v255
    %289 = vmatprep.subr.mxu0 0.0
    %290 = vmatpush1.msra.mxu0 %v254
    %291 = vmatprep.subr.mxu0 0.0
    %292 = vmatpush1.msra.mxu0 %v253
    %293 = vmatprep.subr.mxu0 0.0
    %294 = vmatpush1.msra.mxu0 %v252
    %295 = vmatprep.subr.mxu0 0.0
    %296 = vmatpush1.msra.mxu0 %v251
    %297 = vmatprep.subr.mxu0 0.0
    %298 = vmatpush1.msra.mxu0 %v250
    %299 = vmatprep.subr.mxu0 0.0
    %300 = vmatpush1.msra.mxu0 %v249
    %301 = vmatprep.subr.mxu0 0.0
    %302 = vmatpush1.msra.mxu0 %v248
    %303 = vmatprep.subr.mxu0 0.0
    %304 = vmatpush2.msra.mxu0 0.0
    %305 = vmatprep.subr.mxu0 0.0
    %306 = vmatpush2.msra.mxu0 0.0
    %307 = vmatprep.subr.mxu0 0.0
    %308 = vmatpush2.msra.mxu0 0.0
    %309 = vmatprep.subr.mxu0 0.0
    %310 = vmatpush2.msra.mxu0 0.0
    %311 = vmatprep.subr.mxu0 0.0
    %312 = vmatpush2.msra.mxu0 0.0
    %313 = vmatprep.subr.mxu0 0.0
    %314 = vmatpush2.msra.mxu0 0.0
    %315 = vmatprep.subr.mxu0 0.0
    %316 = vmatpush2.msra.mxu0 0.0
    %317 = vmatprep.subr.mxu0 0.0
    %318 = vmatpush2.msra.mxu0 0.0
    %319 = vmatprep.subr.mxu0 0.0
    %320 = vmatpush2.msra.mxu0 0.0
    %321 = vmatprep.subr.mxu0 0.0
    %322 = vmatpush2.msra.mxu0 0.0
    %323 = vmatprep.subr.mxu0 0.0
    %324 = vmatpush2.msra.mxu0 0.0
    %325 = vmatprep.subr.mxu0 0.0
    %326 = vmatpush2.msra.mxu0 0.0
    %327 = vmatprep.subr.mxu0 0.0
    %328 = vmatpush2.msra.mxu0 0.0
    %329 = vmatprep.subr.mxu0 0.0
    %330 = vmatpush2.msra.mxu0 0.0
    %331 = vmatprep.subr.mxu0 0.0
    %332 = vmatpush2.msra.mxu0 0.0
    %333 = vmatprep.subr.mxu0 0.0
    %334 = vmatpush2.msra.mxu0 0.0
    %335 = vmatprep.mubr.f32.mxu0 0.0
    %336 = vmatmul.mubr.f32.gmra.mxu0 %v244
    %v337 = vpop.f32.mrf.mxu0
    %v338 = vadd.f32 %v269, %v337
    %v339 = vpop.f32.mrf.mxu0
    %340 = vmatprep.mubr.f32.mxu0 0.0
    %341 = vmatmul.mubr.f32.gmra.mxu0 %v245
    %v342 = vpop.f32.mrf.mxu0
    %v343 = vadd.f32 %v269, %v342
    %v344 = vpop.f32.mrf.mxu0
    %345 = vmatprep.mubr.f32.mxu0 0.0
    %346 = vmatmul.mubr.f32.gmra.mxu0 %v246
    %v347 = vpop.f32.mrf.mxu0
    %v348 = vadd.f32 %v269, %v347
    %v349 = vpop.f32.mrf.mxu0
    %350 = vmatprep.mubr.f32.mxu0 0.0
    %351 = vmatmul.mubr.f32.gmra.mxu0 %v247
    %v352 = vpop.f32.mrf.mxu0
    %v353 = vadd.f32 %v269, %v352
    %v354 = vpop.f32.mrf.mxu0
    %355 = vdwg.mxu0
    %356 = vst [vmem:[#allocation2] sm:$0xff] %v338
    %357 = vst [vmem:[#allocation2 + $0x8] sm:$0xff] %v343
    %358 = vst [vmem:[#allocation2 + $0x10] sm:$0xff] %v348
    %359 = vst [vmem:[#allocation2 + $0x18] sm:$0xff] %v353
    // Predicated region
    $region30: #{fps_downsample.3} parent=1 // pred_check
      _
    $region31: #{fps_downsample.3} parent=1 // pred_check_branch
      %361 = sbr.rel (0) target = $region33
    $region32: #{fps_downsample.3} parent=1 // pred_region
      %s363 = ssub.s32 512, 512
      %364 = vsyncadd [#allocation3], %s363
      %s365 = sshll.u32 [#allocation2], 4
      %s366 = int_to_ptr.vmem [resolvable:$true] %s365
      %371 = dma.vmem_to_hbm [thread:$0]  %s366, 512, %s7, [#allocation3], 128, 128, 8
    $region33: #{fps_downsample.3} parent=1 // pred_fallthru
      _
    // Predicated region
    $region34: #{fps_downsample.3} parent=1 // pred_check
      _
    $region35: #{fps_downsample.3} parent=1 // pred_check_branch
      %373 = sbr.rel (0) target = $region37
    $region36: #{fps_downsample.3} parent=1 // pred_region
      %374 = dma.done [#allocation3], 512
    $region37: #{fps_downsample.3} parent=1 // pred_fallthru
      _
    %375 = vsyncpa [#allocation3], 1

// kernel: fps_downsample.2
$region0: #{fps_downsample.2}
  #allocation0 [shape = 'u32[]', space=smem, size = 0x4, offset = 0x4, fixed_abs, tag = 'smem constant byte address 0x4 - core index']
  #allocation1 [shape = 'u32[144,128]{1,0:T(1,128)}', space=vmem, size = 0x12000, scoped, tag = 'internal scratch']
  #allocation2 [shape = 's32[16]{0:T(128)}', space=smem, size = 0x200, scoped, tag = 'scratch operand']
  #allocation3 [shape = 's32[1]{0}', space=sflag, size = 0x4, scoped, tag = 'scoped memory for fps_downsample.2']
  #allocation4 [shape = 'u8[512]{0}', space=smem, size = 0x200, scoped, tag = 'prefetched SMEM operand 0']
  %s0 = inlined_call_operand.vmem [shape: s32[2], index: 0, kind: input, shape index: {}]
  %s1 = inlined_call_operand.vmem [shape: f32[2,3,128], index: 1, kind: input, shape index: {}]
  %s2 = inlined_call_operand.vmem [shape: f32[2,128,3], index: 2, kind: input, shape index: {}]
  %s3 = inlined_call_operand.vmem [shape: f32[2,16,3], index: 3, kind: output, shape index: {}]
  %s4 = sld [smem:[#allocation0]]
  $region55: #{fps_downsample.2} parent=0
    _
  %s6 = ssub.s32 1, %s4
  %s7 = scalar_select 0, %s6, %s4
  %s8 = sshll.u32 %s0, 4
  %s9 = int_to_ptr.vmem [resolvable:$true] %s8
  %11 = dma.vmem_to_smem %s9, 16, [#allocation4], [#allocation3]
  %12 = dma.done [#allocation3], 16
  %13 = sfence
  loop: start=0, step=1, limit=4
  $region2: #{fps_downsample.2} parent=0 // loop_pre_header
    _
  $region3: #{fps_downsample.2} parent=0 // loop_header
    %s15 = sphi 0, %s19
    %p16 = scmp.ge.s32.totalorder %s15, 4
    %s25 = sphi 0, %s27
    %s28 = sphi 0, %s25
    %s29 = sphi 0, %s28
    %s45 = sphi 0, %s29
    %s51 = sphi 0, %s53
    %s54 = sphi 0, %s51
    %s55 = sphi 0, %s54
    %s71 = sphi 0, %s55
    %s77 = sphi 0, %s79
    %s80 = sphi 0, %s77
    %s81 = sphi 0, %s80
    %s97 = sphi 0, %s81
  $region4: #{fps_downsample.2} parent=0 // loop_header_branch
    %18 = sbr.rel (%p16) target = $region8
  $region5: #{fps_downsample.2} parent=0 // loop_body
    %s20 = ssub.s32 %s15, 1
    %s21 = ssub.s32 %s15, 2
    %s22 = sadd.s32 %s15, 1
    %s23 = ssub.s32 %s15, %s22
    %p24 = scmp.eq.s32.totalorder %s23, 0
    %s26 = sadd.s32 %s25, 1
    %s27 = scalar_select %p24, %s25, %s26
    %p30 = pneg %p24
    %p31 = scmp.eq.s32.totalorder %s15, 1
    %p32 = por %p30, %p31
    %p33 = scmp.ne.s32.totalorder %s25, %s28
    %p34 = scmp.eq.s32.totalorder %s15, 0
    %p35 = por %p33, %p34
    %p36 = scmp.ne.s32.totalorder %s25, %s28
    %p37 = scmp.eq.s32.totalorder %s20, 1
    %p38 = por %p36, %p37
    %p39 = scmp.ne.s32.totalorder %s28, %s29
    %p40 = scmp.eq.s32.totalorder %s20, 0
    %p41 = por %p39, %p40
    %p42 = scmp.ne.s32.totalorder %s28, %s29
    %p43 = scmp.eq.s32.totalorder %s21, 1
    %p44 = por %p42, %p43
    %p46 = scmp.ne.s32.totalorder %s29, %s45
    %p47 = scmp.eq.s32.totalorder %s21, 0
    %p48 = por %p46, %p47
    %s49 = ssub.s32 %s15, %s22
    %p50 = scmp.eq.s32.totalorder %s49, 0
    %s52 = sadd.s32 %s51, 1
    %s53 = scalar_select %p50, %s51, %s52
    %p56 = pneg %p50
    %p57 = scmp.eq.s32.totalorder %s15, 1
    %p58 = por %p56, %p57
    %p59 = scmp.ne.s32.totalorder %s51, %s54
    %p60 = scmp.eq.s32.totalorder %s15, 0
    %p61 = por %p59, %p60
    %p62 = scmp.ne.s32.totalorder %s51, %s54
    %p63 = scmp.eq.s32.totalorder %s20, 1
    %p64 = por %p62, %p63
    %p65 = scmp.ne.s32.totalorder %s54, %s55
    %p66 = scmp.eq.s32.totalorder %s20, 0
    %p67 = por %p65, %p66
    %p68 = scmp.ne.s32.totalorder %s54, %s55
    %p69 = scmp.eq.s32.totalorder %s21, 1
    %p70 = por %p68, %p69
    %p72 = scmp.ne.s32.totalorder %s55, %s71
    %p73 = scmp.eq.s32.totalorder %s21, 0
    %p74 = por %p72, %p73
    %s75 = ssub.s32 %s15, %s22
    %p76 = scmp.eq.s32.totalorder %s75, 0
    %s78 = sadd.s32 %s77, 1
    %s79 = scalar_select %p76, %s77, %s78
    %p82 = pneg %p76
    %p83 = scmp.eq.s32.totalorder %s15, 1
    %p84 = por %p82, %p83
    %p85 = scmp.ne.s32.totalorder %s77, %s80
    %p86 = scmp.eq.s32.totalorder %s15, 0
    %p87 = por %p85, %p86
    %p88 = scmp.ne.s32.totalorder %s77, %s80
    %p89 = scmp.eq.s32.totalorder %s20, 1
    %p90 = por %p88, %p89
    %p91 = scmp.ne.s32.totalorder %s80, %s81
    %p92 = scmp.eq.s32.totalorder %s20, 0
    %p93 = por %p91, %p92
    %p94 = scmp.ne.s32.totalorder %s80, %s81
    %p95 = scmp.eq.s32.totalorder %s21, 1
    %p96 = por %p94, %p95
    %p98 = scmp.ne.s32.totalorder %s81, %s97
    %p99 = scmp.eq.s32.totalorder %s21, 0
    %p100 = por %p98, %p99
    %p101 = scmp.le.s32.totalorder 1, %s15
    %p102 = scmp.lt.s32.totalorder %s15, 3
    %p103 = pnand %p101, %p102
    %p104 = pneg %p103
    // Predicated region
    $region9: #{fps_downsample.2} parent=5 // pred_check
      _
    $region10: #{fps_downsample.2} parent=5 // pred_check_branch
      %106 = sbr.rel (%p103) target = $region12
    $region11: #{fps_downsample.2} parent=5 // pred_region
      %s107 = ssub.s32 %s15, 1
    $region12: #{fps_downsample.2} parent=5 // pred_fallthru
      _
    %p108 = scmp.lt.s32.totalorder %s15, 2
    // Predicated region
    $region13: #{fps_downsample.2} parent=5 // pred_check
      %p109 = pneg %p108
    $region14: #{fps_downsample.2} parent=5 // pred_check_branch
      %111 = sbr.rel (%p109) target = $region16
    $region15: #{fps_downsample.2} parent=5 // pred_region
      // Predicated region
      $region17: #{fps_downsample.2} parent=15 // pred_check
        %p112 = pneg %p35
      $region18: #{fps_downsample.2} parent=15 // pred_check_branch
        %114 = sbr.rel (%p112) target = $region20
      $region19: #{fps_downsample.2} parent=15 // pred_region
        %p115 = scmp.lt.s32.totalorder %s15, 1
        %s116 = scalar_select %p115, %s15, 1
        %s117 = smul.addr %s116, 4
        %s118 = scalar_lea.vmem %s1, %s117
      $region20: #{fps_downsample.2} parent=15 // pred_fallthru
        _
      // Predicated region
      $region21: #{fps_downsample.2} parent=15 // pred_check
        %p119 = pneg %p61
      $region22: #{fps_downsample.2} parent=15 // pred_check_branch
        %121 = sbr.rel (%p119) target = $region24
      $region23: #{fps_downsample.2} parent=15 // pred_region
        %p122 = scmp.lt.s32.totalorder %s15, 1
        %s123 = scalar_select %p122, %s15, 1
        %s124 = smul.addr %s123, 16
        %s125 = smul.addr %s124, 8
        %s126 = scalar_lea.vmem %s2, %s125
      $region24: #{fps_downsample.2} parent=15 // pred_fallthru
        _
    $region16: #{fps_downsample.2} parent=5 // pred_fallthru
      _
    %p127 = scmp.le.s32.totalorder 1, %s15
    %p128 = scmp.lt.s32.totalorder %s15, 3
    %p129 = pnand %p127, %p128
    %p130 = pneg %p129
    // Predicated region
    $region25: #{fps_downsample.2} parent=5 // pred_check
      _
    $region26: #{fps_downsample.2} parent=5 // pred_check_branch
      %132 = sbr.rel (%p129) target = $region28
    $region27: #{fps_downsample.2} parent=5 // pred_region
      %s133 = ssub.s32 %s15, 1
      %p134 = scmp.lt.s32.totalorder %s20, 1
      %s135 = scalar_select %p134, %s20, 1
      %s136 = smul.addr %s135, 4
      %s137 = scalar_lea.vmem %s1, %s136
      %p138 = pneg %p41
      %p139 = pneg %p38
      %p140 = scmp.lt.s32.totalorder %s20, 1
      %s141 = scalar_select %p140, %s20, 1
      %s142 = smul.addr %s141, 16
      %s143 = smul.addr %s142, 8
      %s144 = scalar_lea.vmem %s2, %s143
      %p145 = pneg %p67
      %p146 = pneg %p64
      %p147 = pneg %p93
      %p148 = pneg %p90
      %p149 = scmp.lt.s32.totalorder %s20, 1
      %s150 = scalar_select %p149, %s20, 1
      %s151 = smul.addr %s150, 2
      %s152 = smul.addr %s151, 8
      %s153 = scalar_lea.vmem %s3, %s152
      %p154 = scmp.lt.s32.totalorder %s20, 1
      %s155 = scalar_select %p154, %s20, 1
      %s156 = smul.addr %s155, 4
      %s157 = scalar_lea.vmem %s1, %s156
      %p158 = scmp.lt.s32.totalorder %s20, 1
      %s159 = scalar_select %p158, %s20, 1
      %s160 = smul.addr %s159, 16
      %s161 = smul.addr %s160, 8
      %s162 = scalar_lea.vmem %s2, %s161
      %p163 = scmp.lt.s32.totalorder %s20, 1
      %s164 = scalar_select %p163, %s20, 1
      %s165 = smul.addr %s164, 2
      %s166 = smul.addr %s165, 8
      %s167 = scalar_lea.vmem %s3, %s166
      %v168 = vld [vmem:[%s157] sm:$0x7]
      %v169 = vlaneseq
      %v170 = vand.u32 %v169, 127
      %s171 = sld [smem:[#allocation4 + %s20]]
      loop: start=0, step=1, limit=16
      $region29: #{fps_downsample.2} parent=27 // loop_pre_header
        _
      $region30: #{fps_downsample.2} parent=27 // loop_header
        %s173 = sphi 0, %s177
        %p174 = scmp.ge.s32.totalorder %s173, 16
        %v178 = vphi 1e+10, %v201
        %s179 = sphi %s171, %s240
      $region31: #{fps_downsample.2} parent=27 // loop_header_branch
        %176 = sbr.rel (%p174) target = $region35
      $region32: #{fps_downsample.2} parent=27 // loop_body
        %s180 = scalar_lea.smem [#allocation2], %s173
        %181 = sst [smem:[%s180]] %s179
        %v182 = vstv %s179
        %vm183 = vcmp.eq.s32.totalorder %v170, %v182
        %v184 = vsel %vm183, 1, 0
        %vm185 = vcmp.eq.s32.totalorder %v184, 1
        %v186 = vsel %vm185, %v168, 0.0
        %vm187 = vcmask 1042432
        %v188 = vsel %vm187, %v186, 0.0
        %189 = vadd.xlane.f32.xlu0 %v188
        %v190 = vpop.xlane.xlu0 %189
        %v191 = vsub.f32 %v168, %v190
        %v192 = vmul.f32 %v191, %v191
        %v194 = vrot.slane %v192, 1
        %v196 = vadd.f32 %v192, %v194
        %v197 = vrot.slane %v192, 2
        %v199 = vadd.f32 %v196, %v197
        %vm200 = vcmp.lt.f32.partialorder %v199, %v178
        %v201 = vsel %vm200, %v199, %v178
        %vm202 = vcmask 1040384
        %v203 = vsel %vm202, %v201, -inf
        %204 = vmax.xlane.f32.xlu0 %v203
        %v205 = vpop.xlane.xlu0 %204
        %v206 = vrot.slane %v205, 4
        %v207 = vmax.f32 %v205, %v206
        %v208 = vrot.slane %v207, 2
        %v209 = vmax.f32 %v207, %v208
        %v210 = vrot.slane %v209, 1
        %v211 = vmax.f32 %v209, %v210
        %s212 = vtos %v211
        %v213 = vstv %s212
        %vm214 = vcmp.eq.f32.partialorder %v201, %v213
        %v215 = vsel %vm214, %v170, 128
        %v216 = vsel %vm202, %v215, 2147483647
        %v217 = vand.u32 %v216, 65535
        %v218 = vshra.s32 %v216, 16
        %v219 = vcvt.s32.f32 %v217
        %v220 = vcvt.s32.f32 %v218
        %221 = vmin.xlane.f32.xlu0 %v220
        %v222 = vpop.xlane.xlu0 %221
        %vm223 = vcmp.eq.f32.partialorder %v220, %v222
        %v224 = vsel %vm223, %v219, inf
        %225 = vmin.xlane.f32.xlu0 %v224
        %v226 = vpop.xlane.xlu0 %225
        %v227 = vcvt.f32.s32 %v226
        %v228 = vcvt.f32.s32 %v222
        %v229 = vshll.u32 %v228, 16
        %v230 = vadd.s32 %v229, %v227
        %v231 = vrot.slane %v230, 4
        %vm232 = vcmp.lt.s32.totalorder %v230, %v231
        %v233 = vsel %vm232, %v230, %v231
        %v234 = vrot.slane %v233, 2
        %vm235 = vcmp.lt.s32.totalorder %v233, %v234
        %v236 = vsel %vm235, %v233, %v234
        %v237 = vrot.slane %v236, 1
        %vm238 = vcmp.lt.s32.totalorder %v236, %v237
        %v239 = vsel %vm238, %v236, %v237
        %s240 = vtos %v239
      $region33: #{fps_downsample.2} parent=27 // loop_footer
        %s177 = sadd.s32 1, %s173
      $region34: #{fps_downsample.2} parent=27 // loop_footer_branch
        %172 = sbr.rel target = $region30
      $region35: #{fps_downsample.2} parent=27 // loop_exit
        _
      loop: start=0, step=1, limit=16
      $region36: #{fps_downsample.2} parent=27 // loop_pre_header
        _
      $region37: #{fps_downsample.2} parent=27 // loop_header
        %s242 = sphi 0, %s246
        %p243 = scmp.ge.s32.totalorder %s242, 16
      $region38: #{fps_downsample.2} parent=27 // loop_header_branch
        %245 = sbr.rel (%p243) target = $region42
      $region39: #{fps_downsample.2} parent=27 // loop_body
        %s247 = sld [smem:[#allocation2 + %s242]]
        %s248 = scalar_lea.vmem %s162, %s247
        %v249 = vld [vmem:[%s248] sm:$0x1]
        %s250 = scalar_lea.vmem %s167, %s242
        %vm251 = vcmask 16384
        %252 = vst.msk [vmem:[%s250] sm:$0x1] %vm251, %v249
      $region40: #{fps_downsample.2} parent=27 // loop_footer
        %s246 = sadd.s32 1, %s242
      $region41: #{fps_downsample.2} parent=27 // loop_footer_branch
        %241 = sbr.rel target = $region37
      $region42: #{fps_downsample.2} parent=27 // loop_exit
        _
      %p253 = scmp.lt.s32.totalorder %s20, 1
      %s254 = scalar_select %p253, %s20, 1
      %s255 = smul.addr %s254, 2
      %s256 = smul.addr %s255, 8
      %s257 = scalar_lea.vmem %s3, %s256
      // Predicated region
      $region43: #{fps_downsample.2} parent=27 // pred_check
        %p258 = pneg %p90
      $region44: #{fps_downsample.2} parent=27 // pred_check_branch
        %260 = sbr.rel (%p258) target = $region46
      $region45: #{fps_downsample.2} parent=27 // pred_region
        _
      $region46: #{fps_downsample.2} parent=27 // pred_fallthru
        _
    $region28: #{fps_downsample.2} parent=5 // pred_fallthru
      _
    %p261 = scmp.le.s32.totalorder 2, %s15
    // Predicated region
    $region47: #{fps_downsample.2} parent=5 // pred_check
      %p262 = pneg %p261
    $region48: #{fps_downsample.2} parent=5 // pred_check_branch
      %264 = sbr.rel (%p262) target = $region50
    $region49: #{fps_downsample.2} parent=5 // pred_region
      %s265 = ssub.s32 %s15, 2
      // Predicated region
      $region51: #{fps_downsample.2} parent=49 // pred_check
        %p266 = pneg %p96
      $region52: #{fps_downsample.2} parent=49 // pred_check_branch
        %268 = sbr.rel (%p266) target = $region54
      $region53: #{fps_downsample.2} parent=49 // pred_region
        %p269 = scmp.lt.s32.totalorder %s21, 1
        %s270 = scalar_select %p269, %s21, 1
        %s271 = smul.addr %s270, 2
        %s272 = smul.addr %s271, 8
        %s273 = scalar_lea.vmem %s3, %s272
      $region54: #{fps_downsample.2} parent=49 // pred_fallthru
        _
    $region50: #{fps_downsample.2} parent=5 // pred_fallthru
      _
  $region6: #{fps_downsample.2} parent=0 // loop_footer
    %s19 = sadd.s32 1, %s15
  $region7: #{fps_downsample.2} parent=0 // loop_footer_branch
    %14 = sbr.rel target = $region3
  $region8: #{fps_downsample.2} parent=0 // loop_exit
    _

</llo_original>
